<compile_context>
chip_gen: v5e
topology: v5e:2x2
jax: 0.10.0
libtpu: 0.0.40
codegen_flags: <defaults>
</compile_context>

<pallas_src>
import functools
import math

import jax
import jax.numpy as jnp
from jax.experimental import pallas as pl
from jax.experimental.pallas import tpu as pltpu


def _round_up(a: int, b: int) -> int:
    return (a + b - 1) // b * b


def _gather_kernel(ids_ref, table_hbm, out_ref, rows_vmem, sem, *, tm, nsem, scale):
    # ids_ref   : (N_pad,) int32 in SMEM (scalar prefetch)
    # table_hbm : (V, D) table left in HBM (memory_space=pl.ANY)
    # out_ref   : (TM, D) output block in VMEM
    # rows_vmem : (TM, D) gather scratch in VMEM
    # sem       : (NSEM,) DMA semaphores (ring of in-flight row copies)
    base = pl.program_id(0) * tm

    def start_copy(t):
        tok = ids_ref[base + t]
        pltpu.make_async_copy(
            table_hbm.at[pl.ds(tok, 1), :],
            rows_vmem.at[pl.ds(t, 1), :],
            sem.at[t % nsem],
        ).start()

    def wait_copy(t):
        # src ref only needs the right shape for the wait descriptor.
        pltpu.make_async_copy(
            table_hbm.at[pl.ds(0, 1), :],
            rows_vmem.at[pl.ds(t, 1), :],
            sem.at[t % nsem],
        ).wait()

    n_prime = min(nsem, tm)

    @pl.loop(0, n_prime)
    def _prime(t):
        start_copy(t)

    @pl.loop(0, tm)
    def _drain(t):
        wait_copy(t)

        @pl.when(t + nsem < tm)
        def _():
            start_copy(t + nsem)

    # Only remaining VPU work: apply sqrt(d_model) scale on the way out.
    out_ref[...] = rows_vmem[...] * scale


def embedding_forward(x_ids, table, *, tm=256, nsem=8):
    """x_ids: int array of any shape, table: (V, D) -> x_ids.shape + (D,)."""
    orig_shape = x_ids.shape
    v, d = table.shape
    n = int(x_ids.size)
    scale = math.sqrt(d)

    # Clamp ids for DMA safety (PyTorch would raise on out-of-range indices).
    ids_flat = jnp.clip(x_ids.reshape(n).astype(jnp.int32), 0, v - 1)

    # Adaptive token tile: big (amortizes per-step overhead, fills DMA queue),
    # but no larger than needed; keep it a multiple of 8 for sublane layout.
    tm_eff = min(tm, _round_up(n, 8))
    nsem_eff = min(nsem, tm_eff)

    # Pad token count to a multiple of the tile (padded slots gather row 0).
    n_pad = _round_up(n, tm_eff)
    if n_pad != n:
        ids_flat = jnp.pad(ids_flat, (0, n_pad - n))

    kernel = functools.partial(
        _gather_kernel, tm=tm_eff, nsem=nsem_eff, scale=scale)

    out_flat = pl.pallas_call(
        kernel,
        out_shape=jax.ShapeDtypeStruct((n_pad, d), table.dtype),
        grid_spec=pltpu.PrefetchScalarGridSpec(
            num_scalar_prefetch=1,                      # ids -> SMEM
            grid=(n_pad // tm_eff,),
            in_specs=[
                pl.BlockSpec(memory_space=pl.ANY),      # table stays in HBM
            ],
            out_specs=pl.BlockSpec((tm_eff, d), lambda i, ids: (i, 0)),
            scratch_shapes=[
                pltpu.VMEM((tm_eff, d), table.dtype),   # gather buffer
                pltpu.SemaphoreType.DMA((nsem_eff,)),   # DMA ring semaphores
            ],
        ),
        compiler_params=pltpu.CompilerParams(
            dimension_semantics=("parallel",)),         # 2-TC sharding on v7x
    )(ids_flat, table)

    return out_flat[:n].reshape(*orig_shape, d)


if __name__ == "__main__":
    vocab_size = 64
    d_model = 128          # multiple of 128 keeps output stores lane-dense
    batch, seq = 2, 8

    key = jax.random.PRNGKey(0)
    k_ids, k_tab = jax.random.split(key)

    # deterministic "parameters" (nn.Embedding weight ~ N(0,1))
    table = jax.random.normal(k_tab, (vocab_size, d_model), dtype=jnp.float32)
    x = jax.random.randint(k_ids, (batch, seq), 0, vocab_size, dtype=jnp.int32)

    out = embedding_forward(x, table)
    out = jax.block_until_ready(out)

    # reference check (plain JAX)
    ref = jnp.take(table, x, axis=0) * math.sqrt(d_model)
    assert out.shape == (batch, seq, d_model)
    assert jnp.allclose(out, ref, atol=1e-5, rtol=1e-5), "mismatch vs reference"

    print("KERNEL_OK")
</pallas_src>

<mosaic_0001>
module attributes {stable_mosaic.version = 11 : i64} {
  func.func @_gather_kernel(%arg0: i32, %arg1: memref<16xi32, #tpu.memory_space<smem>>, %arg2: memref<64x128xf32, #tpu.memory_space<any>>, %arg3: memref<16x128xf32, #tpu.memory_space<vmem>>, %arg4: memref<16x128xf32, #tpu.memory_space<vmem>>, %arg5: memref<8x!tpu.dma_semaphore, #tpu.memory_space<semaphore_mem>>) attributes {dimension_semantics = [#tpu.dimension_semantics<parallel>], iteration_bounds = array<i64: 1>, scalar_prefetch = 1 : i64, scratch_operands = 2 : i64, tpu.core_type = #tpu.core_type<tc>, window_params = [{}, {transform_indices = @transform_1, window_bounds = array<i64: 16, 128>}]} {
    %c16_i32 = arith.constant 16 : i32
    %0 = arith.muli %arg0, %c16_i32 : i32
    %c0_i32 = arith.constant 0 : i32
    %c8_i32 = arith.constant 8 : i32
    %1 = arith.addi %c0_i32, %c8_i32 : i32
    %c1_i32 = arith.constant 1 : i32
    scf.for %arg6 = %c0_i32 to %1 step %c1_i32  : i32 {
      %c1_i32_8 = arith.constant 1 : i32
      %7 = arith.muli %arg6, %c1_i32_8 : i32
      %c0_i32_9 = arith.constant 0 : i32
      %8 = arith.addi %c0_i32_9, %7 : i32
      %9 = arith.addi %0, %8 : i32
      %10 = arith.index_cast %9 : i32 to index
      %11 = memref.load %arg1[%10] : memref<16xi32, #tpu.memory_space<smem>>
      %c8_i32_10 = arith.constant 8 : i32
      %c0_i32_11 = arith.constant 0 : i32
      %12 = arith.cmpi eq, %c8_i32_10, %c0_i32_11 : i32
      %c1_i32_12 = arith.constant 1 : i32
      %13 = arith.select %12, %c1_i32_12, %c8_i32_10 : i32
      %14 = arith.remsi %8, %13 : i32
      %c0_i32_13 = arith.constant 0 : i32
      %15 = arith.cmpi ne, %14, %c0_i32_13 : i32
      %c0_i32_14 = arith.constant 0 : i32
      %16 = arith.cmpi slt, %14, %c0_i32_14 : i32
      %c0_i32_15 = arith.constant 0 : i32
      %17 = arith.cmpi slt, %13, %c0_i32_15 : i32
      %18 = arith.xori %16, %17 : i1
      %19 = arith.andi %18, %15 : i1
      %20 = arith.addi %14, %13 : i32
      %21 = arith.select %19, %20, %14 : i32
      %c0_i32_16 = arith.constant 0 : i32
      %22 = tpu.memref_slice %arg2[%11, %c0_i32_16] : memref<64x128xf32, #tpu.memory_space<any>> -> memref<1x128xf32, #tpu.memory_space<any>>
      %c0_i32_17 = arith.constant 0 : i32
      %23 = tpu.memref_slice %arg4[%8, %c0_i32_17] : memref<16x128xf32, #tpu.memory_space<vmem>> -> memref<1x128xf32, #tpu.memory_space<vmem>>
      %24 = tpu.memref_slice %arg5[%21] : memref<8x!tpu.dma_semaphore, #tpu.memory_space<semaphore_mem>> -> memref<1x!tpu.dma_semaphore, #tpu.memory_space<semaphore_mem>>
      %25 = tpu.memref_squeeze %24 : memref<1x!tpu.dma_semaphore, #tpu.memory_space<semaphore_mem>> -> memref<!tpu.dma_semaphore, #tpu.memory_space<semaphore_mem>>
      tpu.enqueue_dma source(%22 : memref<1x128xf32, #tpu.memory_space<any>>) target(%23 : memref<1x128xf32, #tpu.memory_space<vmem>>) target_semaphore(%25 : memref<!tpu.dma_semaphore, #tpu.memory_space<semaphore_mem>>)
    }
    %c8_i32_0 = arith.constant 8 : i32
    %c0_i32_1 = arith.constant 0 : i32
    %c16_i32_2 = arith.constant 16 : i32
    %2 = arith.addi %c0_i32_1, %c16_i32_2 : i32
    %c1_i32_3 = arith.constant 1 : i32
    scf.for %arg6 = %c0_i32_1 to %2 step %c1_i32_3  : i32 {
      %c1_i32_8 = arith.constant 1 : i32
      %7 = arith.muli %arg6, %c1_i32_8 : i32
      %c0_i32_9 = arith.constant 0 : i32
      %8 = arith.addi %c0_i32_9, %7 : i32
      %c8_i32_10 = arith.constant 8 : i32
      %c0_i32_11 = arith.constant 0 : i32
      %9 = arith.cmpi eq, %c8_i32_10, %c0_i32_11 : i32
      %c1_i32_12 = arith.constant 1 : i32
      %10 = arith.select %9, %c1_i32_12, %c8_i32_10 : i32
      %11 = arith.remsi %8, %10 : i32
      %c0_i32_13 = arith.constant 0 : i32
      %12 = arith.cmpi ne, %11, %c0_i32_13 : i32
      %c0_i32_14 = arith.constant 0 : i32
      %13 = arith.cmpi slt, %11, %c0_i32_14 : i32
      %c0_i32_15 = arith.constant 0 : i32
      %14 = arith.cmpi slt, %10, %c0_i32_15 : i32
      %15 = arith.xori %13, %14 : i1
      %16 = arith.andi %15, %12 : i1
      %17 = arith.addi %11, %10 : i32
      %18 = arith.select %16, %17, %11 : i32
      %c0_i32_16 = arith.constant 0 : i32
      %c0_i32_17 = arith.constant 0 : i32
      %19 = tpu.memref_slice %arg2[%c0_i32_16, %c0_i32_17] : memref<64x128xf32, #tpu.memory_space<any>> -> memref<1x128xf32, #tpu.memory_space<any>>
      %c0_i32_18 = arith.constant 0 : i32
      %20 = tpu.memref_slice %arg4[%8, %c0_i32_18] : memref<16x128xf32, #tpu.memory_space<vmem>> -> memref<1x128xf32, #tpu.memory_space<vmem>>
      %21 = tpu.memref_slice %arg5[%18] : memref<8x!tpu.dma_semaphore, #tpu.memory_space<semaphore_mem>> -> memref<1x!tpu.dma_semaphore, #tpu.memory_space<semaphore_mem>>
      %22 = tpu.memref_squeeze %21 : memref<1x!tpu.dma_semaphore, #tpu.memory_space<semaphore_mem>> -> memref<!tpu.dma_semaphore, #tpu.memory_space<semaphore_mem>>
      tpu.wait_dma2 semaphore(%22 : memref<!tpu.dma_semaphore, #tpu.memory_space<semaphore_mem>>) src(%19 : memref<1x128xf32, #tpu.memory_space<any>>) dst(%20 : memref<1x128xf32, #tpu.memory_space<vmem>>)
      %c8_i32_19 = arith.constant 8 : i32
      %23 = arith.addi %8, %c8_i32_19 : i32
      %c16_i32_20 = arith.constant 16 : i32
      %24 = arith.cmpi slt, %23, %c16_i32_20 : i32
      %25 = arith.extui %24 : i1 to i32
      %c0_i32_21 = arith.constant 0 : i32
      %26 = arith.cmpi ne, %25, %c0_i32_21 : i32
      scf.if %26 {
        %c8_i32_22 = arith.constant 8 : i32
        %27 = arith.addi %8, %c8_i32_22 : i32
        %28 = arith.addi %0, %27 : i32
        %29 = arith.index_cast %28 : i32 to index
        %30 = memref.load %arg1[%29] : memref<16xi32, #tpu.memory_space<smem>>
        %c8_i32_23 = arith.constant 8 : i32
        %c0_i32_24 = arith.constant 0 : i32
        %31 = arith.cmpi eq, %c8_i32_23, %c0_i32_24 : i32
        %c1_i32_25 = arith.constant 1 : i32
        %32 = arith.select %31, %c1_i32_25, %c8_i32_23 : i32
        %33 = arith.remsi %27, %32 : i32
        %c0_i32_26 = arith.constant 0 : i32
        %34 = arith.cmpi ne, %33, %c0_i32_26 : i32
        %c0_i32_27 = arith.constant 0 : i32
        %35 = arith.cmpi slt, %33, %c0_i32_27 : i32
        %c0_i32_28 = arith.constant 0 : i32
        %36 = arith.cmpi slt, %32, %c0_i32_28 : i32
        %37 = arith.xori %35, %36 : i1
        %38 = arith.andi %37, %34 : i1
        %39 = arith.addi %33, %32 : i32
        %40 = arith.select %38, %39, %33 : i32
        %c0_i32_29 = arith.constant 0 : i32
        %41 = tpu.memref_slice %arg2[%30, %c0_i32_29] : memref<64x128xf32, #tpu.memory_space<any>> -> memref<1x128xf32, #tpu.memory_space<any>>
        %c0_i32_30 = arith.constant 0 : i32
        %42 = tpu.memref_slice %arg4[%27, %c0_i32_30] : memref<16x128xf32, #tpu.memory_space<vmem>> -> memref<1x128xf32, #tpu.memory_space<vmem>>
        %43 = tpu.memref_slice %arg5[%40] : memref<8x!tpu.dma_semaphore, #tpu.memory_space<semaphore_mem>> -> memref<1x!tpu.dma_semaphore, #tpu.memory_space<semaphore_mem>>
        %44 = tpu.memref_squeeze %43 : memref<1x!tpu.dma_semaphore, #tpu.memory_space<semaphore_mem>> -> memref<!tpu.dma_semaphore, #tpu.memory_space<semaphore_mem>>
        tpu.enqueue_dma source(%41 : memref<1x128xf32, #tpu.memory_space<any>>) target(%42 : memref<1x128xf32, #tpu.memory_space<vmem>>) target_semaphore(%44 : memref<!tpu.dma_semaphore, #tpu.memory_space<semaphore_mem>>)
      } else {
      }
    }
    %c16_i32_4 = arith.constant 16 : i32
    %c0 = arith.constant 0 : index
    %c0_5 = arith.constant 0 : index
    %3 = vector.load %arg4[%c0, %c0_5] : memref<16x128xf32, #tpu.memory_space<vmem>>, vector<16x128xf32>
    %cst = arith.constant 11.3137083 : f32
    %4 = vector.broadcast %cst : f32 to vector<16x128xf32>
    %5 = arith.mulf %3, %4 : vector<16x128xf32>
    %c0_6 = arith.constant 0 : index
    %c0_7 = arith.constant 0 : index
    %6 = vector.load %arg3[%c0_6, %c0_7] : memref<16x128xf32, #tpu.memory_space<vmem>>, vector<16x128xf32>
    tpu.vector_store %arg3[%c0_6, %c0_7], %5 {strides = array<i32>} : memref<16x128xf32, #tpu.memory_space<vmem>>, vector<16x128xf32>,
    return
  }
  func.func @transform_1(%arg0: i32, %arg1: memref<16xi32, #tpu.memory_space<smem>>) -> (i32, i32) {
    %c0_i32 = arith.constant 0 : i32
    %c0_i32_0 = arith.constant 0 : i32
    return %arg0, %c0_i32 : i32, i32
  }
}

</mosaic_0001>

<llo_original>
// kernel: tpu_custom_call.1
$region0: #{tpu_custom_call.1}
  #allocation0 [shape = 'u32[]', space=smem, size = 0x4, offset = 0x4, fixed_abs, tag = 'smem constant byte address 0x4 - core index']
  #allocation1 [shape = 'u32[72,128]{1,0:T(1,128)}', space=vmem, size = 0x9000, scoped, tag = 'internal scratch']
  #allocation2 [shape = 'f32[16,128]{1,0:T(8,128)}', space=vmem, size = 0x2000, scoped, tag = 'scratch operand']
  #allocation3 [shape = 's32[8]{0}', space=sflag, size = 0x20, scoped, tag = 'scratch operand']
  #allocation4 [shape = 's32[1]{0}', space=sflag, size = 0x4, scoped, tag = 'scoped memory for tpu_custom_call.1']
  #allocation5 [shape = 'u8[512]{0}', space=smem, size = 0x200, scoped, tag = 'prefetched SMEM operand 0']
  #allocation8 [shape = 's32[]', space=sflag, size = 0x4, offset = 0, fixed_abs, tag = 'sflag constant byte address 0x0 - dummy sync flag']
  #allocation9 [shape = 's32[]', space=sflag, size = 0x4, offset = 0, fixed_abs, tag = 'sflag constant byte address 0x0 - dummy sync flag']
  #allocation10 [shape = 'u32[]', space=smem, size = 0x4, offset = 0x44, fixed_abs, tag = 'smem constant byte address 0x44 - assertion arg 0']
  #allocation11 [shape = 'u32[]', space=smem, size = 0x4, offset = 0x48, fixed_abs, tag = 'smem constant byte address 0x48 - assertion arg 1']
  #allocation12 [shape = 's32[]', space=sflag, size = 0x4, offset = 0, fixed_abs, tag = 'sflag constant byte address 0x0 - dummy sync flag']
  #allocation13 [shape = 's32[]', space=sflag, size = 0x4, offset = 0, fixed_abs, tag = 'sflag constant byte address 0x0 - dummy sync flag']
  %s0 = inlined_call_operand.hbm [shape: s32[16], index: 0, kind: input, shape index: {}]
  %s1 = inlined_call_operand.hbm [shape: f32[64,128], index: 1, kind: input, shape index: {}]
  %s2 = inlined_call_operand.hbm [shape: f32[16,128], index: 2, kind: output, shape index: {}]
  %s3 = sld [smem:[#allocation0]]
  $region36: #{tpu_custom_call.1} parent=0
    _
  %s5 = ssub.s32 1, %s3
  %s6 = scalar_select 0, %s5, %s3
  %s8 = sshll.u32 %s0, 4
  %s9 = int_to_ptr.hbm [resolvable:$true] %s8
  %11 = dma.hbm_to_smem %s9, 16, [#allocation5], [#allocation4]
  %13 = dma.done [#allocation4], 16
  %14 = sfence
  $region1: #{tpu_custom_call.1} parent=0
    #allocation6 [shape = 'u8[8192]{0}', space=vmem, size = 0x2000, scoped, tag = 'output window, operand 0, single buffered']
    #allocation7 [shape = 's32[1]{0}', space=sflag, size = 0x4, scoped, tag = 'scoped memory for tpu_custom_call.1']
    %15 = vsyncpa [#allocation7], 0
    %s16 = smul.u32 0, 16
    loop: start=0, step=1, limit=8
    $region2: #{tpu_custom_call.1} parent=1 // loop_pre_header
      _
    $region3: #{tpu_custom_call.1} parent=1 // loop_header
      %s18 = sphi 0, %s22
      %p19 = scmp.ge.s32.totalorder %s18, 8
    $region4: #{tpu_custom_call.1} parent=1 // loop_header_branch
      %21 = sbr.rel (%p19) target = $region8
    $region5: #{tpu_custom_call.1} parent=1 // loop_body
      %s23 = sadd.s32 %s16, %s18
      %s24 = sld [smem:[#allocation5 + %s23]]
      %p25 = scmp.lt.s32.totalorder %s18, 0
      %s26 = ssub.s32 0, %s18
      %s27 = scalar_select %p25, %s26, %s18
      %s28 = sand.u32 %s27, 7
      %s29 = ssub.s32 0, %s28
      %s30 = scalar_select %p25, %s29, %s28
      %p31 = scmp.ne.s32.totalorder %s30, 0
      %p32 = scmp.lt.s32.totalorder %s30, 0
      %p33 = pnand %p32, %p31
      %p34 = pneg %p33
      %s35 = sadd.s32 %s30, 8
      %s36 = scalar_select %p34, %s35, %s30
      %s37 = scalar_lea.hbm %s1, %s24
      %s38 = scalar_lea.vmem [#allocation2], %s18
      %s39 = scalar_lea.sflag [#allocation3], %s36
      // Predicated region
      $region9: #{tpu_custom_call.1} parent=5 // pred_check
        _
      $region10: #{tpu_custom_call.1} parent=5 // pred_check_branch
        %41 = sbr.rel target = $region12
      $region11: #{tpu_custom_call.1} parent=5 // pred_region
        %42 = sst [smem:[#allocation10]] [#allocation9]
        %43 = sst [smem:[#allocation11]] [#allocation8]
      $region12: #{tpu_custom_call.1} parent=5 // pred_fallthru
        _
      %45 = shalt.err (0)
      %s47 = sshll.u32 %s37, 4
      %s48 = int_to_ptr.hbm [resolvable:$true] %s47
      %s49 = sshll.u32 %s38, 4
      %s50 = int_to_ptr.vmem [resolvable:$true] %s49
      %52 = dma.hbm_to_vmem [thread:$0]  %s48, 16, %s50, %s39
    $region6: #{tpu_custom_call.1} parent=1 // loop_footer
      %s22 = sadd.s32 1, %s18
    $region7: #{tpu_custom_call.1} parent=1 // loop_footer_branch
      %17 = sbr.rel target = $region3
    $region8: #{tpu_custom_call.1} parent=1 // loop_exit
      _
    loop: start=0, step=1, limit=16
    $region13: #{tpu_custom_call.1} parent=1 // loop_pre_header
      _
    $region14: #{tpu_custom_call.1} parent=1 // loop_header
      %s54 = sphi 0, %s58
      %p55 = scmp.ge.s32.totalorder %s54, 16
    $region15: #{tpu_custom_call.1} parent=1 // loop_header_branch
      %57 = sbr.rel (%p55) target = $region19
    $region16: #{tpu_custom_call.1} parent=1 // loop_body
      %p59 = scmp.lt.s32.totalorder %s54, 0
      %s60 = ssub.s32 0, %s54
      %s61 = scalar_select %p59, %s60, %s54
      %s62 = sand.u32 %s61, 7
      %s63 = ssub.s32 0, %s62
      %s64 = scalar_select %p59, %s63, %s62
      %p65 = scmp.ne.s32.totalorder %s64, 0
      %p66 = scmp.lt.s32.totalorder %s64, 0
      %p67 = pnand %p66, %p65
      %p68 = pneg %p67
      %s69 = sadd.s32 %s64, 8
      %s70 = scalar_select %p68, %s69, %s64
      %s71 = scalar_lea.sflag [#allocation3], %s70
      %s72 = smul.u32 1, 1
      %s73 = sshll.u32 %s72, 4
      %74 = dma.done %s71, %s73
      %s75 = sadd.s32 %s54, 8
      %p76 = scmp.lt.s32.totalorder %s75, 16
      // Predicated region
      $region20: #{tpu_custom_call.1} parent=16 // pred_check
        %p77 = pneg %p76
      $region21: #{tpu_custom_call.1} parent=16 // pred_check_branch
        %79 = sbr.rel (%p77) target = $region23
      $region22: #{tpu_custom_call.1} parent=16 // pred_region
        %s80 = sadd.s32 %s16, %s75
        %s81 = sld [smem:[#allocation5 + %s80]]
        %p82 = scmp.lt.s32.totalorder %s75, 0
        %s83 = ssub.s32 0, %s75
        %s84 = scalar_select %p82, %s83, %s75
        %s85 = sand.u32 %s84, 7
        %s86 = ssub.s32 0, %s85
        %s87 = scalar_select %p82, %s86, %s85
        %p88 = scmp.ne.s32.totalorder %s87, 0
        %p89 = scmp.lt.s32.totalorder %s87, 0
        %p90 = pnand %p89, %p88
        %p91 = pneg %p90
        %s92 = sadd.s32 %s87, 8
        %s93 = scalar_select %p91, %s92, %s87
        %s94 = scalar_lea.hbm %s1, %s81
        %s95 = scalar_lea.vmem [#allocation2], %s75
        %s96 = scalar_lea.sflag [#allocation3], %s93
        // Predicated region
        $region24: #{tpu_custom_call.1} parent=22 // pred_check
          _
        $region25: #{tpu_custom_call.1} parent=22 // pred_check_branch
          %98 = sbr.rel target = $region27
        $region26: #{tpu_custom_call.1} parent=22 // pred_region
          %99 = sst [smem:[#allocation10]] [#allocation13]
          %100 = sst [smem:[#allocation11]] [#allocation12]
        $region27: #{tpu_custom_call.1} parent=22 // pred_fallthru
          _
        %102 = shalt.err (0)
        %s104 = sshll.u32 %s94, 4
        %s105 = int_to_ptr.hbm [resolvable:$true] %s104
        %s106 = sshll.u32 %s95, 4
        %s107 = int_to_ptr.vmem [resolvable:$true] %s106
        %109 = dma.hbm_to_vmem [thread:$0]  %s105, 16, %s107, %s96
      $region23: #{tpu_custom_call.1} parent=16 // pred_fallthru
        _
    $region17: #{tpu_custom_call.1} parent=1 // loop_footer
      %s58 = sadd.s32 1, %s54
    $region18: #{tpu_custom_call.1} parent=1 // loop_footer_branch
      %53 = sbr.rel target = $region14
    $region19: #{tpu_custom_call.1} parent=1 // loop_exit
      _
    %v110 = vld [vmem:[#allocation2] sm:$0xff]
    %v111 = vld [vmem:[#allocation2 + $0x8] sm:$0xff]
    %v112 = vmul.f32 %v110, 11.313708
    %v113 = vmul.f32 %v111, 11.313708
    %114 = vst [vmem:[#allocation6] sm:$0xff] %v112
    %115 = vst [vmem:[#allocation6 + $0x8] sm:$0xff] %v113
    // Predicated region
    $region28: #{tpu_custom_call.1} parent=1 // pred_check
      _
    $region29: #{tpu_custom_call.1} parent=1 // pred_check_branch
      %117 = sbr.rel (0) target = $region31
    $region30: #{tpu_custom_call.1} parent=1 // pred_region
      %119 = vsyncadd [#allocation7], 0
      %s120 = sshll.u32 [#allocation6], 4
      %s121 = int_to_ptr.vmem [resolvable:$true] %s120
      %s122 = sshll.u32 %s2, 4
      %s123 = int_to_ptr.hbm [resolvable:$true] %s122
      %128 = dma.vmem_to_hbm [thread:$0]  %s121, 256, %s123, [#allocation7], 128, 128, 8
    $region31: #{tpu_custom_call.1} parent=1 // pred_fallthru
      _
    // Predicated region
    $region32: #{tpu_custom_call.1} parent=1 // pred_check
      _
    $region33: #{tpu_custom_call.1} parent=1 // pred_check_branch
      %130 = sbr.rel (0) target = $region35
    $region34: #{tpu_custom_call.1} parent=1 // pred_region
      %132 = dma.done [#allocation7], 256
    $region35: #{tpu_custom_call.1} parent=1 // pred_fallthru
      _
    %133 = vsyncpa [#allocation7], 1
  %134 = vsyncmov [#allocation3]
  %s135 = vpop.sfrf %134
  %p136 = scmp.eq.s32.totalorder %s135, 0
  %p137 = pneg %p136
  %139 = shalt.err (%p137)
  %s140 = scalar_lea.sflag [#allocation3], 1
  %141 = vsyncmov %s140
  %s142 = vpop.sfrf %141
  %p143 = scmp.eq.s32.totalorder %s142, 0
  %p144 = pneg %p143
  %146 = shalt.err (%p144)
  %s147 = scalar_lea.sflag [#allocation3], 2
  %148 = vsyncmov %s147
  %s149 = vpop.sfrf %148
  %p150 = scmp.eq.s32.totalorder %s149, 0
  %p151 = pneg %p150
  %153 = shalt.err (%p151)
  %s154 = scalar_lea.sflag [#allocation3], 3
  %155 = vsyncmov %s154
  %s156 = vpop.sfrf %155
  %p157 = scmp.eq.s32.totalorder %s156, 0
  %p158 = pneg %p157
  %160 = shalt.err (%p158)
  %s161 = scalar_lea.sflag [#allocation3], 4
  %162 = vsyncmov %s161
  %s163 = vpop.sfrf %162
  %p164 = scmp.eq.s32.totalorder %s163, 0
  %p165 = pneg %p164
  %167 = shalt.err (%p165)
  %s168 = scalar_lea.sflag [#allocation3], 5
  %169 = vsyncmov %s168
  %s170 = vpop.sfrf %169
  %p171 = scmp.eq.s32.totalorder %s170, 0
  %p172 = pneg %p171
  %174 = shalt.err (%p172)
  %s175 = scalar_lea.sflag [#allocation3], 6
  %176 = vsyncmov %s175
  %s177 = vpop.sfrf %176
  %p178 = scmp.eq.s32.totalorder %s177, 0
  %p179 = pneg %p178
  %181 = shalt.err (%p179)
  %s182 = scalar_lea.sflag [#allocation3], 7
  %183 = vsyncmov %s182
  %s184 = vpop.sfrf %183
  %p185 = scmp.eq.s32.totalorder %s184, 0
  %p186 = pneg %p185
  %188 = shalt.err (%p186)

</llo_original>
